<compile_context>
chip_gen: v7x
topology: tpu7x:2x2x1
jax: 0.10.0
libtpu: 0.0.40
codegen_flags: <defaults>
</compile_context>

<pallas_src>
import functools

import numpy as np
import jax
import jax.numpy as jnp
from jax import lax
from jax.experimental import pallas as pl
from jax.experimental.pallas import tpu as pltpu


def _lmf_kernel(x_ref, tgt_ref, m_ref, w_ref, a_ref, out_ref, *,
                s, gamma, n_valid, tb):
    i = pl.program_id(0)
    x = x_ref[...]                       # (TB, C) f32 logits
    tgt = tgt_ref[...]                   # (TB, 1) i32 targets
    c = x.shape[-1]

    # Row-validity and one-hot mask built in-kernel (no one-hot in HBM).
    row = lax.broadcasted_iota(jnp.int32, (tb, 1), 0) + i * tb
    valid = row < n_valid                                # (TB, 1) bool
    lane = lax.broadcasted_iota(jnp.int32, (tb, c), 1)   # (TB, C)
    mask = (lane == tgt) & valid                         # one-hot of target
    maskf = mask.astype(jnp.float32)
    validf = valid.astype(jnp.float32)

    # ---------------- Focal loss (reduction='sum') ----------------
    x_max = jnp.max(x, axis=-1, keepdims=True)
    lse = jnp.log(jnp.sum(jnp.exp(x - x_max), axis=-1, keepdims=True)) + x_max
    xt = jnp.sum(maskf * x, axis=-1, keepdims=True)      # x[target]; 0 on pad rows
    neg_logpt = lse * validf - xt                        # -log p_t ; 0 on pad rows
    alpha_t = jnp.sum(maskf * a_ref[...], axis=-1, keepdims=True)
    pt = jnp.exp(-neg_logpt)
    omp = jnp.maximum(1.0 - pt, 0.0)                     # clamp: no NaN from pt>1

    g = float(gamma)
    gi = int(round(g))
    if g == gi and gi >= 1:                              # integral gamma: VPU muls
        fw = omp
        for _ in range(gi - 1):
            fw = fw * omp
    elif g == 0.0:
        fw = jnp.ones_like(omp)
    else:                                                # fallback for float gamma
        fw = omp ** g
    focal_partial = jnp.sum(alpha_t * fw * neg_logpt)

    # ------------- LDAM loss (cross-entropy; mean applied in wrapper) -------------
    batch_m = jnp.sum(maskf * m_ref[...], axis=-1, keepdims=True)
    z = s * (jnp.where(mask, x - batch_m, x) * w_ref[...])
    z_max = jnp.max(z, axis=-1, keepdims=True)
    lse2 = jnp.log(jnp.sum(jnp.exp(z - z_max), axis=-1, keepdims=True)) + z_max
    zt = jnp.sum(maskf * z, axis=-1, keepdims=True)      # z[target]; 0 on pad rows
    ldam_partial = jnp.sum(lse2 * validf - zt)

    # Lane-dense partial-sum block: sublane 0 = focal, sublane 1 = LDAM CE sum.
    sub = lax.broadcasted_iota(jnp.int32, (1, 8, 128), 1)
    out_ref[...] = jnp.where(sub == 0, focal_partial,
                             jnp.where(sub == 1, ldam_partial, 0.0))


def lmf_loss(x, target, cls_num_list,
             per_cls_weights=(0.03, 0.07, 0.2, 0.35, 0.35),
             alpha=(0.03, 0.07, 0.2, 0.35, 0.35),
             max_m=0.5, s=30.0, gamma=2.0, block_rows=512):
    """x: [N, C] float logits, target: [N] int class ids."""
    x = jnp.asarray(x)
    N, C = x.shape
    assert len(per_cls_weights) == C and len(alpha) == C and len(cls_num_list) == C

    # LDAM margins: m_c = 1/sqrt(sqrt(n_c)), rescaled so max margin == max_m.
    m_list = 1.0 / np.sqrt(np.sqrt(np.asarray(cls_num_list, dtype=np.float32)))
    m_list = m_list * (max_m / np.max(m_list))

    # Batch tile: multiple of 8 sublanes, capped at block_rows (VMEM-friendly on
    # v7x's 64 MiB VMEM and beyond; ~512 rows already hits the HBM roofline).
    tb = int(min(int(block_rows), int(np.ceil(N / 8.0)) * 8))
    tb = max(8, (tb // 8) * 8)
    num_tiles = int(np.ceil(N / tb))
    n_pad = num_tiles * tb

    x32 = x.astype(jnp.float32)
    tgt = jnp.asarray(target, jnp.int32)
    if n_pad != N:
        x32 = jnp.pad(x32, ((0, n_pad - N), (0, 0)))
        tgt = jnp.pad(tgt, (0, n_pad - N))
    tgt = tgt.reshape(n_pad, 1)

    m_vec = jnp.asarray(m_list, jnp.float32).reshape(1, C)
    w_vec = jnp.asarray(per_cls_weights, jnp.float32).reshape(1, C)
    a_vec = jnp.asarray(alpha, jnp.float32).reshape(1, C)

    kernel = functools.partial(_lmf_kernel, s=float(s), gamma=float(gamma),
                               n_valid=int(N), tb=tb)

    partials = pl.pallas_call(
        kernel,
        out_shape=jax.ShapeDtypeStruct((num_tiles, 8, 128), jnp.float32),
        grid_spec=pltpu.PrefetchScalarGridSpec(
            num_scalar_prefetch=0,
            grid=(num_tiles,),
            in_specs=[
                pl.BlockSpec((tb, C), lambda i: (i, 0)),   # logits tile
                pl.BlockSpec((tb, 1), lambda i: (i, 0)),   # int32 targets column
                pl.BlockSpec((1, C), lambda i: (0, 0)),    # LDAM margins
                pl.BlockSpec((1, C), lambda i: (0, 0)),    # per-class logit weights
                pl.BlockSpec((1, C), lambda i: (0, 0)),    # focal alpha
            ],
            out_specs=pl.BlockSpec((1, 8, 128), lambda i: (i, 0, 0)),
        ),
        compiler_params=pltpu.CompilerParams(
            dimension_semantics=("parallel",),             # independent tiles -> megacore on v7x
            vmem_limit_bytes=32 * 1024 * 1024,
        ),
        cost_estimate=pl.CostEstimate(
            flops=int(20 * n_pad * C),
            transcendentals=int(2 * n_pad * C + 2 * n_pad),
            bytes_accessed=int(n_pad * (C + 1) * 4 + num_tiles * 8 * 128 * 4),
        ),
    )(x32, tgt, m_vec, w_vec, a_vec)

    loss_focal = jnp.sum(partials[:, 0, 0])          # focal: reduction='sum'
    loss_ldam = jnp.sum(partials[:, 1, 0]) / N       # LDAM: mean over real batch
    return (loss_focal + loss_ldam) * 0.5


def _reference_lmf(x, target, cls_num_list, per_cls_weights, alpha,
                   max_m=0.5, s=30.0, gamma=2.0):
    """Pure-JAX reference mirroring the PyTorch module."""
    x = jnp.asarray(x, jnp.float32)
    N, C = x.shape
    m_list = 1.0 / np.sqrt(np.sqrt(np.asarray(cls_num_list, dtype=np.float32)))
    m_list = jnp.asarray(m_list * (max_m / np.max(m_list)))
    oh = jax.nn.one_hot(target, C, dtype=jnp.float32)

    # focal, sum reduction
    log_sm = jax.nn.log_softmax(x, axis=1)
    logpt = jnp.sum(oh * log_sm, axis=1)
    a = jnp.asarray(alpha, jnp.float32)[target]
    pt = jnp.exp(logpt)
    loss_focal = jnp.sum(a * (1 - pt) ** gamma * (-logpt))

    # LDAM, mean CE
    batch_m = jnp.sum(oh * m_list[None, :], axis=1, keepdims=True)
    out = jnp.where(oh > 0.5, x - batch_m, x)
    out = out * jnp.asarray(per_cls_weights, jnp.float32)[None, :]
    log_sm2 = jax.nn.log_softmax(s * out, axis=1)
    loss_ldam = jnp.mean(-jnp.sum(oh * log_sm2, axis=1))
    return (loss_focal + loss_ldam) / 2


if __name__ == "__main__":
    key = jax.random.PRNGKey(0)
    N, C = 20, 5
    cls_num_list = [100, 50, 20, 10, 5]
    per_cls_weights = [0.03, 0.07, 0.2, 0.35, 0.35]
    alpha = [0.03, 0.07, 0.2, 0.35, 0.35]

    kx, kt = jax.random.split(key)
    x = jax.random.normal(kx, (N, C), dtype=jnp.float32)
    target = jax.random.randint(kt, (N,), 0, C, dtype=jnp.int32)

    # block_rows=8 -> 3 batch tiles incl. a partial one (exercises masking path).
    loss = lmf_loss(x, target, cls_num_list, per_cls_weights, alpha, block_rows=8)
    loss = jax.block_until_ready(loss)

    ref = _reference_lmf(x, target, cls_num_list, per_cls_weights, alpha)
    np.testing.assert_allclose(np.asarray(loss), np.asarray(ref), rtol=1e-5, atol=1e-5)

    print("KERNEL_OK")
</pallas_src>

<mosaic_0001>
module attributes {stable_mosaic.version = 11 : i64} {
  func.func @_lmf_kernel(%arg0: i32, %arg1: memref<8x5xf32, #tpu.memory_space<vmem>>, %arg2: memref<8x1xi32, #tpu.memory_space<vmem>>, %arg3: memref<1x5xf32, #tpu.memory_space<vmem>>, %arg4: memref<1x5xf32, #tpu.memory_space<vmem>>, %arg5: memref<1x5xf32, #tpu.memory_space<vmem>>, %arg6: memref<1x8x128xf32, #tpu.memory_space<vmem>>) attributes {dimension_semantics = [#tpu.dimension_semantics<parallel>], iteration_bounds = array<i64: 3>, scalar_prefetch = 0 : i64, scratch_operands = 0 : i64, tpu.core_type = #tpu.core_type<tc>, window_params = [{transform_indices = @transform_0, window_bounds = array<i64: 8, 5>}, {transform_indices = @transform_1, window_bounds = array<i64: 8, 1>}, {pipeline_mode = #tpu.pipeline_mode<synchronous>, transform_indices = @transform_2, window_bounds = array<i64: 1, 5>}, {pipeline_mode = #tpu.pipeline_mode<synchronous>, transform_indices = @transform_3, window_bounds = array<i64: 1, 5>}, {pipeline_mode = #tpu.pipeline_mode<synchronous>, transform_indices = @transform_4, window_bounds = array<i64: 1, 5>}, {transform_indices = @transform_5, window_bounds = array<i64: 1, 8, 128>}]} {
    %c0 = arith.constant 0 : index
    %c0_0 = arith.constant 0 : index
    %0 = vector.load %arg1[%c0, %c0_0] : memref<8x5xf32, #tpu.memory_space<vmem>>, vector<8x5xf32>
    %c0_1 = arith.constant 0 : index
    %c0_2 = arith.constant 0 : index
    %1 = vector.load %arg2[%c0_1, %c0_2] : memref<8x1xi32, #tpu.memory_space<vmem>>, vector<8x1xi32>
    %2 = tpu.iota {dimensions = array<i32: 0>} : vector<8x1xi32>
    %c8_i32 = arith.constant 8 : i32
    %3 = arith.muli %arg0, %c8_i32 : i32
    %4 = vector.broadcast %3 : i32 to vector<8x1xi32>
    %5 = arith.addi %2, %4 : vector<8x1xi32>
    %c20_i32 = arith.constant 20 : i32
    %6 = vector.broadcast %c20_i32 : i32 to vector<8x1xi32>
    %7 = arith.cmpi slt, %5, %6 : vector<8x1xi32>
    %8 = tpu.iota {dimensions = array<i32: 1>} : vector<8x5xi32>
    %9 = vector.broadcast %1 : vector<8x1xi32> to vector<8x5xi32>
    %10 = arith.cmpi eq, %8, %9 : vector<8x5xi32>
    %11 = vector.broadcast %7 : vector<8x1xi1> to vector<8x5xi1>
    %12 = arith.andi %10, %11 : vector<8x5xi1>
    %13 = arith.extui %12 : vector<8x5xi1> to vector<8x5xi32>
    %14 = arith.sitofp %13 : vector<8x5xi32> to vector<8x5xf32>
    %15 = arith.extui %7 : vector<8x1xi1> to vector<8x1xi32>
    %16 = arith.sitofp %15 : vector<8x1xi32> to vector<8x1xf32>
    %cst = arith.constant dense<0xFF800000> : vector<8xf32>
    %17 = vector.multi_reduction <maximumf>, %0, %cst [1] : vector<8x5xf32> to vector<8xf32>
    %18 = vector.shape_cast %17 : vector<8xf32> to vector<8x1xf32>
    %19 = vector.broadcast %18 : vector<8x1xf32> to vector<8x5xf32>
    %20 = arith.subf %0, %19 : vector<8x5xf32>
    %21 = math.exp %20 : vector<8x5xf32>
    %cst_3 = arith.constant dense<0.000000e+00> : vector<8xf32>
    %22 = vector.multi_reduction <add>, %21, %cst_3 [1] : vector<8x5xf32> to vector<8xf32>
    %23 = vector.shape_cast %22 : vector<8xf32> to vector<8x1xf32>
    %24 = math.log %23 : vector<8x1xf32>
    %25 = arith.addf %24, %18 : vector<8x1xf32>
    %26 = arith.mulf %14, %0 : vector<8x5xf32>
    %cst_4 = arith.constant dense<0.000000e+00> : vector<8xf32>
    %27 = vector.multi_reduction <add>, %26, %cst_4 [1] : vector<8x5xf32> to vector<8xf32>
    %28 = vector.shape_cast %27 : vector<8xf32> to vector<8x1xf32>
    %29 = arith.mulf %25, %16 : vector<8x1xf32>
    %30 = arith.subf %29, %28 : vector<8x1xf32>
    %c0_5 = arith.constant 0 : index
    %c0_6 = arith.constant 0 : index
    %31 = vector.load %arg5[%c0_5, %c0_6] : memref<1x5xf32, #tpu.memory_space<vmem>>, vector<1x5xf32>
    %32 = vector.broadcast %31 : vector<1x5xf32> to vector<8x5xf32>
    %33 = arith.mulf %14, %32 : vector<8x5xf32>
    %cst_7 = arith.constant dense<0.000000e+00> : vector<8xf32>
    %34 = vector.multi_reduction <add>, %33, %cst_7 [1] : vector<8x5xf32> to vector<8xf32>
    %35 = vector.shape_cast %34 : vector<8xf32> to vector<8x1xf32>
    %cst_8 = arith.constant 0.000000e+00 : f32
    %36 = vector.broadcast %cst_8 : f32 to vector<8x1xf32>
    %37 = arith.subf %36, %30 : vector<8x1xf32>
    %38 = math.exp %37 : vector<8x1xf32>
    %cst_9 = arith.constant 1.000000e+00 : f32
    %39 = vector.broadcast %cst_9 : f32 to vector<8x1xf32>
    %40 = arith.subf %39, %38 : vector<8x1xf32>
    %cst_10 = arith.constant 0.000000e+00 : f32
    %41 = vector.broadcast %cst_10 : f32 to vector<8x1xf32>
    %42 = arith.maximumf %40, %41 : vector<8x1xf32>
    %43 = arith.mulf %42, %42 : vector<8x1xf32>
    %44 = arith.mulf %35, %43 : vector<8x1xf32>
    %45 = arith.mulf %44, %30 : vector<8x1xf32>
    %46 = vector.shape_cast %45 : vector<8x1xf32> to vector<1x8x1xf32>
    %cst_11 = arith.constant dense<0.000000e+00> : vector<1xf32>
    %47 = vector.multi_reduction <add>, %46, %cst_11 [1, 2] : vector<1x8x1xf32> to vector<1xf32>
    %48 = vector.shape_cast %47 : vector<1xf32> to vector<1x1x1xf32>
    %49 = vector.extract %48[0, 0, 0] : f32 from vector<1x1x1xf32>
    %c0_12 = arith.constant 0 : index
    %c0_13 = arith.constant 0 : index
    %50 = vector.load %arg3[%c0_12, %c0_13] : memref<1x5xf32, #tpu.memory_space<vmem>>, vector<1x5xf32>
    %51 = vector.broadcast %50 : vector<1x5xf32> to vector<8x5xf32>
    %52 = arith.mulf %14, %51 : vector<8x5xf32>
    %cst_14 = arith.constant dense<0.000000e+00> : vector<8xf32>
    %53 = vector.multi_reduction <add>, %52, %cst_14 [1] : vector<8x5xf32> to vector<8xf32>
    %54 = vector.shape_cast %53 : vector<8xf32> to vector<8x1xf32>
    %55 = vector.broadcast %54 : vector<8x1xf32> to vector<8x5xf32>
    %56 = arith.subf %0, %55 : vector<8x5xf32>
    %57 = arith.select %12, %56, %0 : vector<8x5xi1>, vector<8x5xf32>
    %c0_15 = arith.constant 0 : index
    %c0_16 = arith.constant 0 : index
    %58 = vector.load %arg4[%c0_15, %c0_16] : memref<1x5xf32, #tpu.memory_space<vmem>>, vector<1x5xf32>
    %59 = vector.broadcast %58 : vector<1x5xf32> to vector<8x5xf32>
    %60 = arith.mulf %57, %59 : vector<8x5xf32>
    %cst_17 = arith.constant 3.000000e+01 : f32
    %61 = vector.broadcast %cst_17 : f32 to vector<8x5xf32>
    %62 = arith.mulf %61, %60 : vector<8x5xf32>
    %cst_18 = arith.constant dense<0xFF800000> : vector<8xf32>
    %63 = vector.multi_reduction <maximumf>, %62, %cst_18 [1] : vector<8x5xf32> to vector<8xf32>
    %64 = vector.shape_cast %63 : vector<8xf32> to vector<8x1xf32>
    %65 = vector.broadcast %64 : vector<8x1xf32> to vector<8x5xf32>
    %66 = arith.subf %62, %65 : vector<8x5xf32>
    %67 = math.exp %66 : vector<8x5xf32>
    %cst_19 = arith.constant dense<0.000000e+00> : vector<8xf32>
    %68 = vector.multi_reduction <add>, %67, %cst_19 [1] : vector<8x5xf32> to vector<8xf32>
    %69 = vector.shape_cast %68 : vector<8xf32> to vector<8x1xf32>
    %70 = math.log %69 : vector<8x1xf32>
    %71 = arith.addf %70, %64 : vector<8x1xf32>
    %72 = arith.mulf %14, %62 : vector<8x5xf32>
    %cst_20 = arith.constant dense<0.000000e+00> : vector<8xf32>
    %73 = vector.multi_reduction <add>, %72, %cst_20 [1] : vector<8x5xf32> to vector<8xf32>
    %74 = vector.shape_cast %73 : vector<8xf32> to vector<8x1xf32>
    %75 = arith.mulf %71, %16 : vector<8x1xf32>
    %76 = arith.subf %75, %74 : vector<8x1xf32>
    %77 = vector.shape_cast %76 : vector<8x1xf32> to vector<1x8x1xf32>
    %cst_21 = arith.constant dense<0.000000e+00> : vector<1xf32>
    %78 = vector.multi_reduction <add>, %77, %cst_21 [1, 2] : vector<1x8x1xf32> to vector<1xf32>
    %79 = vector.shape_cast %78 : vector<1xf32> to vector<1x1x1xf32>
    %80 = vector.extract %79[0, 0, 0] : f32 from vector<1x1x1xf32>
    %81 = tpu.iota {dimensions = array<i32: 1>} : vector<1x8x128xi32>
    %c0_i32 = arith.constant 0 : i32
    %82 = vector.broadcast %c0_i32 : i32 to vector<1x8x128xi32>
    %83 = arith.cmpi eq, %81, %82 : vector<1x8x128xi32>
    %c1_i32 = arith.constant 1 : i32
    %84 = vector.broadcast %c1_i32 : i32 to vector<1x8x128xi32>
    %85 = arith.cmpi eq, %81, %84 : vector<1x8x128xi32>
    %cst_22 = arith.constant 0.000000e+00 : f32
    %86 = vector.broadcast %80 : f32 to vector<1x8x128xf32>
    %87 = vector.broadcast %cst_22 : f32 to vector<1x8x128xf32>
    %88 = arith.select %85, %86, %87 : vector<1x8x128xi1>, vector<1x8x128xf32>
    %89 = vector.broadcast %49 : f32 to vector<1x8x128xf32>
    %90 = arith.select %83, %89, %88 : vector<1x8x128xi1>, vector<1x8x128xf32>
    %c0_23 = arith.constant 0 : index
    %c0_24 = arith.constant 0 : index
    %c0_25 = arith.constant 0 : index
    %91 = vector.load %arg6[%c0_23, %c0_24, %c0_25] : memref<1x8x128xf32, #tpu.memory_space<vmem>>, vector<1x8x128xf32>
    tpu.vector_store %arg6[%c0_23, %c0_24, %c0_25], %90 {strides = array<i32>} : memref<1x8x128xf32, #tpu.memory_space<vmem>>, vector<1x8x128xf32>,
    return
  }
  func.func @transform_0(%arg0: i32) -> (i32, i32) {
    %c0_i32 = arith.constant 0 : i32
    %c0_i32_0 = arith.constant 0 : i32
    return %arg0, %c0_i32 : i32, i32
  }
  func.func @transform_1(%arg0: i32) -> (i32, i32) {
    %c0_i32 = arith.constant 0 : i32
    %c0_i32_0 = arith.constant 0 : i32
    return %arg0, %c0_i32 : i32, i32
  }
  func.func @transform_2(%arg0: i32) -> (i32, i32) {
    %c0_i32 = arith.constant 0 : i32
    %c0_i32_0 = arith.constant 0 : i32
    %c0_i32_1 = arith.constant 0 : i32
    return %c0_i32, %c0_i32_0 : i32, i32
  }
  func.func @transform_3(%arg0: i32) -> (i32, i32) {
    %c0_i32 = arith.constant 0 : i32
    %c0_i32_0 = arith.constant 0 : i32
    %c0_i32_1 = arith.constant 0 : i32
    return %c0_i32, %c0_i32_0 : i32, i32
  }
  func.func @transform_4(%arg0: i32) -> (i32, i32) {
    %c0_i32 = arith.constant 0 : i32
    %c0_i32_0 = arith.constant 0 : i32
    %c0_i32_1 = arith.constant 0 : i32
    return %c0_i32, %c0_i32_0 : i32, i32
  }
  func.func @transform_5(%arg0: i32) -> (i32, i32, i32) {
    %c0_i32 = arith.constant 0 : i32
    %c0_i32_0 = arith.constant 0 : i32
    %c0_i32_1 = arith.constant 0 : i32
    return %arg0, %c0_i32, %c0_i32_0 : i32, i32, i32
  }
}

</mosaic_0001>

<llo_original>
// kernel: tpu_custom_call.1
$region0: #{tpu_custom_call.1}
  #allocation0 [shape = 'u32[]', space=smem, size = 0x4, offset = 0x4, fixed_abs, tag = 'smem constant byte address 0x4 - core index']
  #allocation1 [shape = 'u32[144,128]{1,0:T(1,128)}', space=vmem, size = 0x12000, scoped, tag = 'internal scratch']
  %s0 = inlined_call_operand.vmem [shape: f32[24,5], index: 0, kind: input, shape index: {}]
  %s1 = inlined_call_operand.vmem [shape: s32[24,1], index: 1, kind: input, shape index: {}]
  %s2 = inlined_call_operand.vmem [shape: f32[1,5], index: 2, kind: input, shape index: {}]
  %s3 = inlined_call_operand.vmem [shape: f32[1,5], index: 3, kind: input, shape index: {}]
  %s4 = inlined_call_operand.vmem [shape: f32[1,5], index: 4, kind: input, shape index: {}]
  %s5 = inlined_call_operand.hbm [shape: f32[3,8,128], index: 5, kind: output, shape index: {}]
  %s6 = sld [smem:[#allocation0]]
  $region53: #{tpu_custom_call.1} parent=0
    _
  %s8 = ssub.s32 1, %s6
  %s9 = scalar_select 0, %s8, %s6
  $region1: #{tpu_custom_call.1} parent=0
    #allocation2 [shape = 'u8[8192]{0}', space=vmem, size = 0x2000, scoped, tag = 'output window, operand 0']
    #allocation3 [shape = 's32[2]{0}', space=sflag, size = 0x8, scoped, tag = 'scoped memory for tpu_custom_call.1']
    %10 = vsyncpa [#allocation3], 0
    %s11 = scalar_lea.sflag [#allocation3], 1
    %12 = vsyncpa %s11, 0
    loop: start=0, step=1, limit=5
    $region2: #{tpu_custom_call.1} parent=1 // loop_pre_header
      _
    $region3: #{tpu_custom_call.1} parent=1 // loop_header
      %s14 = sphi 0, %s18
      %p15 = scmp.ge.s32.totalorder %s14, 5
      %s24 = sphi 0, %s26
      %s27 = sphi 0, %s24
      %s28 = sphi 0, %s27
      %s44 = sphi 0, %s28
      %s50 = sphi 0, %s52
      %s53 = sphi 0, %s50
      %s54 = sphi 0, %s53
      %s70 = sphi 0, %s54
      %s74 = sphi 0, %s74
      %s76 = sphi 0, %s74
      %s77 = sphi 0, %s76
      %s91 = sphi 0, %s77
      %s95 = sphi 0, %s95
      %s97 = sphi 0, %s95
      %s98 = sphi 0, %s97
      %s112 = sphi 0, %s98
      %s116 = sphi 0, %s116
      %s118 = sphi 0, %s116
      %s119 = sphi 0, %s118
      %s133 = sphi 0, %s119
      %s139 = sphi 0, %s141
      %s142 = sphi 0, %s139
      %s143 = sphi 0, %s142
      %s159 = sphi 0, %s143
    $region4: #{tpu_custom_call.1} parent=1 // loop_header_branch
      %17 = sbr.rel (%p15) target = $region8
    $region5: #{tpu_custom_call.1} parent=1 // loop_body
      %s19 = ssub.s32 %s14, 1
      %s20 = ssub.s32 %s14, 2
      %s21 = sadd.s32 %s14, 1
      %s22 = ssub.s32 %s14, %s21
      %p23 = scmp.eq.s32.totalorder %s22, 0
      %s25 = sadd.s32 %s24, 1
      %s26 = scalar_select %p23, %s24, %s25
      %p29 = pneg %p23
      %p30 = scmp.eq.s32.totalorder %s14, 2
      %p31 = por %p29, %p30
      %p32 = scmp.ne.s32.totalorder %s24, %s27
      %p33 = scmp.eq.s32.totalorder %s14, 0
      %p34 = por %p32, %p33
      %p35 = scmp.ne.s32.totalorder %s24, %s27
      %p36 = scmp.eq.s32.totalorder %s19, 2
      %p37 = por %p35, %p36
      %p38 = scmp.ne.s32.totalorder %s27, %s28
      %p39 = scmp.eq.s32.totalorder %s19, 0
      %p40 = por %p38, %p39
      %p41 = scmp.ne.s32.totalorder %s27, %s28
      %p42 = scmp.eq.s32.totalorder %s20, 2
      %p43 = por %p41, %p42
      %p45 = scmp.ne.s32.totalorder %s28, %s44
      %p46 = scmp.eq.s32.totalorder %s20, 0
      %p47 = por %p45, %p46
      %s48 = ssub.s32 %s14, %s21
      %p49 = scmp.eq.s32.totalorder %s48, 0
      %s51 = sadd.s32 %s50, 1
      %s52 = scalar_select %p49, %s50, %s51
      %p55 = pneg %p49
      %p56 = scmp.eq.s32.totalorder %s14, 2
      %p57 = por %p55, %p56
      %p58 = scmp.ne.s32.totalorder %s50, %s53
      %p59 = scmp.eq.s32.totalorder %s14, 0
      %p60 = por %p58, %p59
      %p61 = scmp.ne.s32.totalorder %s50, %s53
      %p62 = scmp.eq.s32.totalorder %s19, 2
      %p63 = por %p61, %p62
      %p64 = scmp.ne.s32.totalorder %s53, %s54
      %p65 = scmp.eq.s32.totalorder %s19, 0
      %p66 = por %p64, %p65
      %p67 = scmp.ne.s32.totalorder %s53, %s54
      %p68 = scmp.eq.s32.totalorder %s20, 2
      %p69 = por %p67, %p68
      %p71 = scmp.ne.s32.totalorder %s54, %s70
      %p72 = scmp.eq.s32.totalorder %s20, 0
      %p73 = por %p71, %p72
      %s75 = sadd.s32 %s74, 1
      %p78 = scmp.eq.s32.totalorder %s14, 2
      %p79 = scmp.ne.s32.totalorder %s74, %s76
      %p80 = scmp.eq.s32.totalorder %s14, 0
      %p81 = por %p79, %p80
      %p82 = scmp.ne.s32.totalorder %s74, %s76
      %p83 = scmp.eq.s32.totalorder %s19, 2
      %p84 = por %p82, %p83
      %p85 = scmp.ne.s32.totalorder %s76, %s77
      %p86 = scmp.eq.s32.totalorder %s19, 0
      %p87 = por %p85, %p86
      %p88 = scmp.ne.s32.totalorder %s76, %s77
      %p89 = scmp.eq.s32.totalorder %s20, 2
      %p90 = por %p88, %p89
      %p92 = scmp.ne.s32.totalorder %s77, %s91
      %p93 = scmp.eq.s32.totalorder %s20, 0
      %p94 = por %p92, %p93
      %s96 = sadd.s32 %s95, 1
      %p99 = scmp.eq.s32.totalorder %s14, 2
      %p100 = scmp.ne.s32.totalorder %s95, %s97
      %p101 = scmp.eq.s32.totalorder %s14, 0
      %p102 = por %p100, %p101
      %p103 = scmp.ne.s32.totalorder %s95, %s97
      %p104 = scmp.eq.s32.totalorder %s19, 2
      %p105 = por %p103, %p104
      %p106 = scmp.ne.s32.totalorder %s97, %s98
      %p107 = scmp.eq.s32.totalorder %s19, 0
      %p108 = por %p106, %p107
      %p109 = scmp.ne.s32.totalorder %s97, %s98
      %p110 = scmp.eq.s32.totalorder %s20, 2
      %p111 = por %p109, %p110
      %p113 = scmp.ne.s32.totalorder %s98, %s112
      %p114 = scmp.eq.s32.totalorder %s20, 0
      %p115 = por %p113, %p114
      %s117 = sadd.s32 %s116, 1
      %p120 = scmp.eq.s32.totalorder %s14, 2
      %p121 = scmp.ne.s32.totalorder %s116, %s118
      %p122 = scmp.eq.s32.totalorder %s14, 0
      %p123 = por %p121, %p122
      %p124 = scmp.ne.s32.totalorder %s116, %s118
      %p125 = scmp.eq.s32.totalorder %s19, 2
      %p126 = por %p124, %p125
      %p127 = scmp.ne.s32.totalorder %s118, %s119
      %p128 = scmp.eq.s32.totalorder %s19, 0
      %p129 = por %p127, %p128
      %p130 = scmp.ne.s32.totalorder %s118, %s119
      %p131 = scmp.eq.s32.totalorder %s20, 2
      %p132 = por %p130, %p131
      %p134 = scmp.ne.s32.totalorder %s119, %s133
      %p135 = scmp.eq.s32.totalorder %s20, 0
      %p136 = por %p134, %p135
      %s137 = ssub.s32 %s14, %s21
      %p138 = scmp.eq.s32.totalorder %s137, 0
      %s140 = sadd.s32 %s139, 1
      %s141 = scalar_select %p138, %s139, %s140
      %p144 = pneg %p138
      %p145 = scmp.eq.s32.totalorder %s14, 2
      %p146 = por %p144, %p145
      %p147 = scmp.ne.s32.totalorder %s139, %s142
      %p148 = scmp.eq.s32.totalorder %s14, 0
      %p149 = por %p147, %p148
      %p150 = scmp.ne.s32.totalorder %s139, %s142
      %p151 = scmp.eq.s32.totalorder %s19, 2
      %p152 = por %p150, %p151
      %p153 = scmp.ne.s32.totalorder %s142, %s143
      %p154 = scmp.eq.s32.totalorder %s19, 0
      %p155 = por %p153, %p154
      %p156 = scmp.ne.s32.totalorder %s142, %s143
      %p157 = scmp.eq.s32.totalorder %s20, 2
      %p158 = por %p156, %p157
      %p160 = scmp.ne.s32.totalorder %s143, %s159
      %p161 = scmp.eq.s32.totalorder %s20, 0
      %p162 = por %p160, %p161
      %p163 = scmp.le.s32.totalorder 1, %s14
      %p164 = scmp.lt.s32.totalorder %s14, 4
      %p165 = pnand %p163, %p164
      %p166 = pneg %p165
      // Predicated region
      $region9: #{tpu_custom_call.1} parent=5 // pred_check
        _
      $region10: #{tpu_custom_call.1} parent=5 // pred_check_branch
        %168 = sbr.rel (%p165) target = $region12
      $region11: #{tpu_custom_call.1} parent=5 // pred_region
        %s169 = ssub.s32 %s14, 1
        // Predicated region
        $region13: #{tpu_custom_call.1} parent=11 // pred_check
          %p170 = pneg %p87
        $region14: #{tpu_custom_call.1} parent=11 // pred_check_branch
          %172 = sbr.rel (%p170) target = $region16
        $region15: #{tpu_custom_call.1} parent=11 // pred_region
          _
        $region16: #{tpu_custom_call.1} parent=11 // pred_fallthru
          _
        // Predicated region
        $region17: #{tpu_custom_call.1} parent=11 // pred_check
          %p173 = pneg %p108
        $region18: #{tpu_custom_call.1} parent=11 // pred_check_branch
          %175 = sbr.rel (%p173) target = $region20
        $region19: #{tpu_custom_call.1} parent=11 // pred_region
          _
        $region20: #{tpu_custom_call.1} parent=11 // pred_fallthru
          _
        // Predicated region
        $region21: #{tpu_custom_call.1} parent=11 // pred_check
          %p176 = pneg %p129
        $region22: #{tpu_custom_call.1} parent=11 // pred_check_branch
          %178 = sbr.rel (%p176) target = $region24
        $region23: #{tpu_custom_call.1} parent=11 // pred_region
          _
        $region24: #{tpu_custom_call.1} parent=11 // pred_fallthru
          _
      $region12: #{tpu_custom_call.1} parent=5 // pred_fallthru
        _
      %p179 = scmp.lt.s32.totalorder %s14, 3
      // Predicated region
      $region25: #{tpu_custom_call.1} parent=5 // pred_check
        %p180 = pneg %p179
      $region26: #{tpu_custom_call.1} parent=5 // pred_check_branch
        %182 = sbr.rel (%p180) target = $region28
      $region27: #{tpu_custom_call.1} parent=5 // pred_region
        // Predicated region
        $region29: #{tpu_custom_call.1} parent=27 // pred_check
          %p183 = pneg %p34
        $region30: #{tpu_custom_call.1} parent=27 // pred_check_branch
          %185 = sbr.rel (%p183) target = $region32
        $region31: #{tpu_custom_call.1} parent=27 // pred_region
          %p186 = scmp.lt.s32.totalorder %s14, 2
          %s187 = scalar_select %p186, %s14, 2
          %s188 = smul.addr %s187, 8
          %s189 = scalar_lea.vmem %s0, %s188
        $region32: #{tpu_custom_call.1} parent=27 // pred_fallthru
          _
        // Predicated region
        $region33: #{tpu_custom_call.1} parent=27 // pred_check
          %p190 = pneg %p60
        $region34: #{tpu_custom_call.1} parent=27 // pred_check_branch
          %192 = sbr.rel (%p190) target = $region36
        $region35: #{tpu_custom_call.1} parent=27 // pred_region
          %p193 = scmp.lt.s32.totalorder %s14, 2
          %s194 = scalar_select %p193, %s14, 2
          %s195 = smul.addr %s194, 8
          %s196 = scalar_lea.vmem %s1, %s195
        $region36: #{tpu_custom_call.1} parent=27 // pred_fallthru
          _
      $region28: #{tpu_custom_call.1} parent=5 // pred_fallthru
        _
      %p197 = scmp.le.s32.totalorder 1, %s14
      %p198 = scmp.lt.s32.totalorder %s14, 4
      %p199 = pnand %p197, %p198
      %p200 = pneg %p199
      // Predicated region
      $region37: #{tpu_custom_call.1} parent=5 // pred_check
        _
      $region38: #{tpu_custom_call.1} parent=5 // pred_check_branch
        %202 = sbr.rel (%p199) target = $region40
      $region39: #{tpu_custom_call.1} parent=5 // pred_region
        %s203 = ssub.s32 %s14, 1
        %p204 = scmp.lt.s32.totalorder %s19, 2
        %s205 = scalar_select %p204, %s19, 2
        %s206 = smul.addr %s205, 8
        %s207 = scalar_lea.vmem %s0, %s206
        %p208 = pneg %p40
        %p209 = pneg %p37
        %p210 = scmp.lt.s32.totalorder %s19, 2
        %s211 = scalar_select %p210, %s19, 2
        %s212 = smul.addr %s211, 8
        %s213 = scalar_lea.vmem %s1, %s212
        %p214 = pneg %p66
        %p215 = pneg %p63
        %p216 = pneg %p87
        %p217 = pneg %p84
        %p218 = pneg %p108
        %p219 = pneg %p105
        %p220 = pneg %p129
        %p221 = pneg %p126
        %p222 = pneg %p155
        %p223 = pneg %p152
        %s224 = sand.u32 %s142, 1
        %s225 = scalar_lea.sflag [#allocation3], %s224
        %s226 = sand.u32 %s142, 1
        %s227 = smul.addr %s226, 8
        %s228 = scalar_lea.vmem [#allocation2], %s227
        %p229 = scmp.lt.s32.totalorder %s19, 2
        %s230 = scalar_select %p229, %s19, 2
        %s231 = smul.addr %s230, 8
        %s232 = scalar_lea.vmem %s0, %s231
        %p233 = scmp.lt.s32.totalorder %s19, 2
        %s234 = scalar_select %p233, %s19, 2
        %s235 = smul.addr %s234, 8
        %s236 = scalar_lea.vmem %s1, %s235
        %v237 = vld [vmem:[%s232] sm:$0xff]
        %v238 = vld [vmem:[%s236] sm:$0xff]
        %v239 = vlaneseq
        %v240 = vshrl.u32 %v239, 7
        %s241 = smul.u32 %s19, 8
        %v242 = vstv %s241
        %v243 = vadd.s32 %v240, %v242
        %vm244 = vcmp.lt.s32.totalorder %v243, 20
        %v245 = vlaneseq
        %v246 = vand.u32 %v245, 127
        %247 = vset.pattern.permute.xlu0 0
        %248 = vperm.xlu0 %247, %v238
        %v249 = vpop.permute.xlu0 %248
        %vm250 = vcmp.eq.s32.totalorder %v246, %v249
        %v251 = vsel %vm244, 1, 0
        %vm252 = vcmp.eq.s32.totalorder %v251, 1
        %vm253 = vmand %vm250, %vm252
        %v254 = vsel %vm253, 1, 0
        %v255 = vcvt.s32.f32 %v254
        %v256 = vcvt.s32.f32 %v251
        %vm257 = vcmask 39936
        %v258 = vsel %vm257, %v237, -inf
        %259 = vmax.xlane.f32.xlu0 %v258
        %v260 = vpop.xlane.xlu0 %259
        %v261 = vsub.f32 %v237, %v260
        %v262 = vmul.f32 %v261, 1.442695
        %v263 = vpow.pop %v262
        %v264 = vsel %vm257, %v263, 0.0
        %265 = vadd.xlane.f32.xlu0 %v264
        %v266 = vpop.xlane.xlu0 %265
        %v267 = vlog2.pop %v266
        %v268 = vmul.f32 %v267, 0.6931472
        %v269 = vadd.f32 %v268, %v260
        %v270 = vmul.f32 %v255, %v237
        %v271 = vsel %vm257, %v270, 0.0
        %272 = vadd.xlane.f32.xlu0 %v271
        %v273 = vpop.xlane.xlu0 %272
        %v274 = vmul.f32 %v269, %v256
        %v275 = vsub.f32 %v274, %v273
        %v276 = vld [vmem:[%s4] sm:$0x1]
        %v278 = vlaneseq
        %v279 = vshrl.u32 %v278, 7
        %v280 = vsub.s32 0, %v279
        %v281 = vrot.slane %v276, %v280
        %v283 = vmul.f32 %v255, %v281
        %v284 = vsel %vm257, %v283, 0.0
        %285 = vadd.xlane.f32.xlu0 %v284
        %v286 = vpop.xlane.xlu0 %285
        %v287 = vsub.f32 0.0, %v275
        %v288 = vmul.f32 %v287, 1.442695
        %v289 = vpow.pop %v288
        %v290 = vsub.f32 1.0, %v289
        %v291 = vmax.f32 %v290, 0.0
        %v292 = vmul.f32 %v291, %v291
        %v293 = vmul.f32 %v286, %v292
        %v294 = vmul.f32 %v293, %v275
        %vm295 = vcmask 7168
        %v296 = vsel %vm295, %v294, 0.0
        %297 = vadd.xlane.f32.xlu0 %v296
        %v298 = vpop.xlane.xlu0 %297
        %v299 = vrot.slane %v298, 4
        %v300 = vadd.f32 %v298, %v299
        %v301 = vrot.slane %v300, 2
        %v302 = vadd.f32 %v300, %v301
        %v303 = vrot.slane %v302, 1
        %v304 = vadd.f32 %v302, %v303
        %s305 = vtos %v304
        %v306 = vld [vmem:[%s2] sm:$0x1]
        %v308 = vlaneseq
        %v309 = vshrl.u32 %v308, 7
        %v310 = vsub.s32 0, %v309
        %v311 = vrot.slane %v306, %v310
        %v313 = vmul.f32 %v255, %v311
        %v314 = vsel %vm257, %v313, 0.0
        %315 = vadd.xlane.f32.xlu0 %v314
        %v316 = vpop.xlane.xlu0 %315
        %v317 = vsub.f32 %v237, %v316
        %v318 = vsel %vm253, %v317, %v237
        %v319 = vld [vmem:[%s3] sm:$0x1]
        %v321 = vlaneseq
        %v322 = vshrl.u32 %v321, 7
        %v323 = vsub.s32 0, %v322
        %v324 = vrot.slane %v319, %v323
        %v326 = vmul.f32 %v318, %v324
        %v327 = vmul.f32 %v326, 30.0
        %v328 = vsel %vm257, %v327, -inf
        %329 = vmax.xlane.f32.xlu0 %v328
        %v330 = vpop.xlane.xlu0 %329
        %v331 = vsub.f32 %v327, %v330
        %v332 = vmul.f32 %v331, 1.442695
        %v333 = vpow.pop %v332
        %v334 = vsel %vm257, %v333, 0.0
        %335 = vadd.xlane.f32.xlu0 %v334
        %v336 = vpop.xlane.xlu0 %335
        %v337 = vlog2.pop %v336
        %v338 = vmul.f32 %v337, 0.6931472
        %v339 = vadd.f32 %v338, %v330
        %v340 = vmul.f32 %v255, %v327
        %v341 = vsel %vm257, %v340, 0.0
        %342 = vadd.xlane.f32.xlu0 %v341
        %v343 = vpop.xlane.xlu0 %342
        %v344 = vmul.f32 %v339, %v256
        %v345 = vsub.f32 %v344, %v343
        %v346 = vsel %vm295, %v345, 0.0
        %347 = vadd.xlane.f32.xlu0 %v346
        %v348 = vpop.xlane.xlu0 %347
        %v349 = vrot.slane %v348, 4
        %v350 = vadd.f32 %v348, %v349
        %v351 = vrot.slane %v350, 2
        %v352 = vadd.f32 %v350, %v351
        %v353 = vrot.slane %v352, 1
        %v354 = vadd.f32 %v352, %v353
        %s355 = vtos %v354
        %vm356 = vcmp.eq.s32.totalorder %v240, 0
        %vm357 = vcmp.eq.s32.totalorder %v240, 1
        %v358 = vstv %s355
        %v359 = vsel %vm357, %v358, 0.0
        %v360 = vstv %s305
        %v361 = vsel %vm356, %v360, %v359
        %362 = vst [vmem:[%s228] sm:$0xff] %v361
        %s363 = sand.u32 %s142, 1
        %s364 = scalar_lea.sflag [#allocation3], %s363
        %s365 = sand.u32 %s142, 1
        %s366 = smul.addr %s365, 8
        %s367 = scalar_lea.vmem [#allocation2], %s366
        // Predicated region
        $region41: #{tpu_custom_call.1} parent=39 // pred_check
          %p368 = pneg %p152
        $region42: #{tpu_custom_call.1} parent=39 // pred_check_branch
          %370 = sbr.rel (%p368) target = $region44
        $region43: #{tpu_custom_call.1} parent=39 // pred_region
          %s372 = ssub.s32 128, 128
          %373 = vsyncadd %s364, %s372
          %s374 = smul.addr %s19, 128
          %s375 = scalar_lea.hbm %s5, %s374
          %s377 = sshll.u32 %s367, 4
          %s378 = int_to_ptr.vmem [resolvable:$true] %s377
          %380 = dma.vmem_to_hbm [thread:$0]  %s378, 128, %s375, %s364
        $region44: #{tpu_custom_call.1} parent=39 // pred_fallthru
          _
      $region40: #{tpu_custom_call.1} parent=5 // pred_fallthru
        _
      %p381 = scmp.le.s32.totalorder 2, %s14
      // Predicated region
      $region45: #{tpu_custom_call.1} parent=5 // pred_check
        %p382 = pneg %p381
      $region46: #{tpu_custom_call.1} parent=5 // pred_check_branch
        %384 = sbr.rel (%p382) target = $region48
      $region47: #{tpu_custom_call.1} parent=5 // pred_region
        %s385 = ssub.s32 %s14, 2
        // Predicated region
        $region49: #{tpu_custom_call.1} parent=47 // pred_check
          %p386 = pneg %p158
        $region50: #{tpu_custom_call.1} parent=47 // pred_check_branch
          %388 = sbr.rel (%p386) target = $region52
        $region51: #{tpu_custom_call.1} parent=47 // pred_region
          %s389 = sand.u32 %s143, 1
          %s390 = scalar_lea.sflag [#allocation3], %s389
          %s391 = sand.u32 %s143, 1
          %s392 = smul.addr %s391, 8
          %s393 = scalar_lea.vmem [#allocation2], %s392
          %394 = dma.done %s390, 128
        $region52: #{tpu_custom_call.1} parent=47 // pred_fallthru
          _
      $region48: #{tpu_custom_call.1} parent=5 // pred_fallthru
        _
    $region6: #{tpu_custom_call.1} parent=1 // loop_footer
      %s18 = sadd.s32 1, %s14
    $region7: #{tpu_custom_call.1} parent=1 // loop_footer_branch
      %13 = sbr.rel target = $region3
    $region8: #{tpu_custom_call.1} parent=1 // loop_exit
      _
    %395 = vsyncpa [#allocation3], 1
    %s396 = scalar_lea.sflag [#allocation3], 1
    %397 = vsyncpa %s396, 1

</llo_original>
